<compile_context>
chip_gen: v5e
topology: v5e:2x2
jax: 0.10.0
libtpu: 0.0.40
codegen_flags: <defaults>
</compile_context>

<pallas_src>
import functools

import jax
import jax.numpy as jnp
from jax import lax
from jax.experimental import pallas as pl
from jax.experimental.pallas import tpu as pltpu


def _channel_attention_kernel(x_ref, w1t_ref, b1_ref, w2t_ref, b2_ref,
                              o_ref, acc_ref, *, hw_total, hw_tile):
    # x_ref  : (nb, C, hw_tile)  streamed tile of the flattened NCHW input
    # w1t_ref: (C, Ci)           proj1 weight (transposed), resident
    # b1_ref : (1, Ci)
    # w2t_ref: (Ci, C)           proj2 weight (transposed), resident
    # b2_ref : (1, C)
    # o_ref  : (nb, 1, C)        sigmoid attention weights
    # acc_ref: (nb, C) f32       cross-step running channel sums (VMEM scratch)
    k = pl.program_id(1)
    k_last = pl.num_programs(1) - 1

    @pl.when(k == 0)
    def _init():
        acc_ref[...] = jnp.zeros_like(acc_ref)

    x = x_ref[...].astype(jnp.float32)

    if hw_total % hw_tile != 0:
        # Ragged spatial tail: mask out-of-range lanes, but only on the final
        # step so the mask ops stay off the hot streaming path.
        @pl.when(k != k_last)
        def _body():
            acc_ref[...] += jnp.sum(x, axis=-1)

        @pl.when(k == k_last)
        def _tail():
            lane = lax.broadcasted_iota(jnp.int32, (1, 1, hw_tile), 2)
            xm = jnp.where(lane + k * hw_tile < hw_total, x, 0.0)
            acc_ref[...] += jnp.sum(xm, axis=-1)
    else:
        acc_ref[...] += jnp.sum(x, axis=-1)

    @pl.when(k == k_last)
    def _finalize():
        # AdaptiveAvgPool2d(1) result for this batch tile.
        pooled = acc_ref[...] * (1.0 / float(hw_total))                  # (nb, C)
        # proj1 (1x1 conv == matmul over channels) + ReLU.  Tiny; runs once
        # per batch tile and hides behind the next tile's DMA.
        h = jnp.dot(pooled, w1t_ref[...].astype(jnp.float32),
                    preferred_element_type=jnp.float32)
        h = jnp.maximum(h + b1_ref[...].astype(jnp.float32), 0.0)        # (nb, Ci)
        # proj2 (1x1 conv) + sigmoid.
        y = jnp.dot(h, w2t_ref[...].astype(jnp.float32),
                    preferred_element_type=jnp.float32)
        y = jax.nn.sigmoid(y + b2_ref[...].astype(jnp.float32))          # (nb, C)
        o_ref[...] = y[:, None, :].astype(o_ref.dtype)


def channel_attention(x, w1, b1, w2, b2, *, target_block_bytes=8 * 1024 * 1024):
    """ChannelAttention forward.

    x : (N, C, H, W) NCHW.
    w1: (Ci, C, 1, 1), b1: (Ci,)   (proj1 1x1 conv)
    w2: (C, Ci, 1, 1), b2: (C,)    (proj2 1x1 conv)
    Returns (N, C, 1, 1), matching the PyTorch module's output.

    target_block_bytes: streamed x block size target per grid step (the op is
    HBM-bound, so bigger blocks amortize the fixed per-step cost; 8 MiB keeps
    the double-buffered block well inside v7x's 64 MiB VMEM).
    """
    N, C, H, W = x.shape
    Ci = w1.shape[0]
    HW = H * W
    itemsize = jnp.dtype(x.dtype).itemsize

    x_flat = x.reshape(N, C, HW)
    w1t = w1.reshape(Ci, C).T           # (C, Ci)
    w2t = w2.reshape(C, Ci).T           # (Ci, C)
    b1r = b1.reshape(1, Ci)
    b2r = b2.reshape(1, C)

    # --- Tile selection: maximize bytes per grid step -----------------------
    bytes_per_sample = C * HW * itemsize
    if bytes_per_sample <= target_block_bytes:
        # Whole spatial extent per sample: one contiguous slab per batch tile,
        # the reduction axis collapses to a single step, no mask path.
        hw_tile = HW
        nb = min(N, max(1, target_block_bytes // bytes_per_sample))
        if nb >= N and N >= 2:
            # Keep the leading "parallel" grid axis >= 2 so both v7x
            # TensorCores get work (harmless on single-TC v5e/v6e).
            nb = (N + 1) // 2
    else:
        # Stream the flattened spatial axis in large lane-aligned tiles sized
        # from the byte target (not a fixed lane count).
        nb = 1
        hw_tile = max(128, (target_block_bytes // (C * itemsize)) // 128 * 128)
        hw_tile = min(hw_tile, HW)

    grid = (pl.cdiv(N, nb), pl.cdiv(HW, hw_tile))

    # --- Scoped-VMEM budget: actual need + headroom, capped at v7x's 64 MiB --
    x_block_bytes = nb * C * hw_tile * itemsize
    resident_bytes = (2 * C * Ci + C + Ci) * 4
    out_bytes = nb * C * itemsize
    acc_bytes = nb * C * 4
    need = 2 * x_block_bytes + 4 * resident_bytes + 2 * out_bytes + acc_bytes
    vmem_limit = int(min(max(need + (2 << 20), 16 << 20), 64 << 20))

    cost = pl.CostEstimate(
        flops=N * C * HW + 4 * N * C * Ci,        # spatial reduction + tiny MLP
        transcendentals=N * C,                    # sigmoid
        bytes_accessed=N * C * HW * itemsize + resident_bytes + N * C * itemsize,
    )

    kernel = functools.partial(_channel_attention_kernel,
                               hw_total=HW, hw_tile=hw_tile)

    out = pl.pallas_call(
        kernel,
        out_shape=jax.ShapeDtypeStruct((N, 1, C), x.dtype),
        grid_spec=pltpu.PrefetchScalarGridSpec(
            num_scalar_prefetch=0,
            grid=grid,
            in_specs=[
                # Streamed input: fresh (nb, C, hw_tile) tile every spatial step.
                pl.BlockSpec((nb, C, hw_tile), lambda n, k: (n, 0, k)),
                # Resident tiny operands: constant block index => no re-DMA.
                pl.BlockSpec((C, Ci), lambda n, k: (0, 0)),
                pl.BlockSpec((1, Ci), lambda n, k: (0, 0)),
                pl.BlockSpec((Ci, C), lambda n, k: (0, 0)),
                pl.BlockSpec((1, C), lambda n, k: (0, 0)),
            ],
            # Output block constant across the reduction axis -> resident
            # accumulator semantics; written once at the finalize step.
            out_specs=pl.BlockSpec((nb, 1, C), lambda n, k: (n, 0, 0)),
            scratch_shapes=[pltpu.VMEM((nb, C), jnp.float32)],
        ),
        compiler_params=pltpu.CompilerParams(
            dimension_semantics=("parallel", "arbitrary"),
            vmem_limit_bytes=vmem_limit,
        ),
        cost_estimate=cost,
    )(x_flat, w1t, b1r, w2t, b2r)

    return out.reshape(N, C, 1, 1)


def _reference(x, w1, b1, w2, b2):
    Ci, C = w1.shape[0], w1.shape[1]
    pooled = jnp.mean(x, axis=(2, 3))                                    # (N, C)
    h = jnp.maximum(pooled @ w1.reshape(Ci, C).T + b1, 0.0)              # (N, Ci)
    y = jax.nn.sigmoid(h @ w2.reshape(C, Ci).T + b2)                     # (N, C)
    return y.reshape(x.shape[0], C, 1, 1)


if __name__ == "__main__":
    # in_channels=32 so default inter_channels = 32 // 16 = 2.
    N, C, H, W = 2, 32, 32, 32
    Ci = C // 16

    key = jax.random.PRNGKey(0)
    kx, kw1, kb1, kw2, kb2 = jax.random.split(key, 5)

    x = jax.random.normal(kx, (N, C, H, W), dtype=jnp.float32)
    w1 = jax.random.normal(kw1, (Ci, C, 1, 1), dtype=jnp.float32) * 0.1
    b1 = jax.random.normal(kb1, (Ci,), dtype=jnp.float32) * 0.1
    w2 = jax.random.normal(kw2, (C, Ci, 1, 1), dtype=jnp.float32) * 0.1
    b2 = jax.random.normal(kb2, (C,), dtype=jnp.float32) * 0.1

    # Main run: full-HW slab path (single contiguous DMA per batch tile,
    # batch split into 2 grid points for the parallel axis).
    out = channel_attention(x, w1, b1, w2, b2)
    out = jax.block_until_ready(out)
    ref = _reference(x, w1, b1, w2, b2)
    assert out.shape == (N, C, 1, 1)
    assert jnp.allclose(out, ref, atol=1e-5, rtol=1e-5)

    # Secondary run: force the streamed-reduction path with a ragged spatial
    # tail (HW=400, 128-lane tiles) to exercise the masked last step.
    x2 = jax.random.normal(kx, (N, C, 20, 20), dtype=jnp.float32)
    out2 = channel_attention(x2, w1, b1, w2, b2, target_block_bytes=16 * 1024)
    out2 = jax.block_until_ready(out2)
    ref2 = _reference(x2, w1, b1, w2, b2)
    assert jnp.allclose(out2, ref2, atol=1e-5, rtol=1e-5)

    print("KERNEL_OK")
</pallas_src>

<mosaic_0001>
module attributes {stable_mosaic.version = 11 : i64} {
  func.func @_channel_attention_kernel(%arg0: i32, %arg1: i32, %arg2: memref<1x32x1024xf32, #tpu.memory_space<vmem>>, %arg3: memref<32x2xf32, #tpu.memory_space<vmem>>, %arg4: memref<1x2xf32, #tpu.memory_space<vmem>>, %arg5: memref<2x32xf32, #tpu.memory_space<vmem>>, %arg6: memref<1x32xf32, #tpu.memory_space<vmem>>, %arg7: memref<1x1x32xf32, #tpu.memory_space<vmem>>, %arg8: memref<1x32xf32, #tpu.memory_space<vmem>>) attributes {dimension_semantics = [#tpu.dimension_semantics<parallel>, #tpu.dimension_semantics<arbitrary>], iteration_bounds = array<i64: 2, 1>, scalar_prefetch = 0 : i64, scratch_operands = 1 : i64, tpu.core_type = #tpu.core_type<tc>, window_params = [{transform_indices = @transform_0, window_bounds = array<i64: 1, 32, 1024>}, {pipeline_mode = #tpu.pipeline_mode<synchronous>, transform_indices = @transform_1, window_bounds = array<i64: 32, 2>}, {pipeline_mode = #tpu.pipeline_mode<synchronous>, transform_indices = @transform_2, window_bounds = array<i64: 1, 2>}, {pipeline_mode = #tpu.pipeline_mode<synchronous>, transform_indices = @transform_3, window_bounds = array<i64: 2, 32>}, {pipeline_mode = #tpu.pipeline_mode<synchronous>, transform_indices = @transform_4, window_bounds = array<i64: 1, 32>}, {transform_indices = @transform_5, window_bounds = array<i64: 1, 1, 32>}]} {
    %c0_i32 = arith.constant 0 : i32
    %0 = arith.cmpi eq, %arg1, %c0_i32 : i32
    %1 = arith.extui %0 : i1 to i32
    %c0_i32_0 = arith.constant 0 : i32
    %2 = arith.cmpi ne, %1, %c0_i32_0 : i32
    scf.if %2 {
      %cst_9 = arith.constant 0.000000e+00 : f32
      %11 = vector.broadcast %cst_9 : f32 to vector<1x32xf32>
      %c0_10 = arith.constant 0 : index
      %c0_11 = arith.constant 0 : index
      %12 = vector.load %arg8[%c0_10, %c0_11] : memref<1x32xf32, #tpu.memory_space<vmem>>, vector<1x32xf32>
      tpu.vector_store %arg8[%c0_10, %c0_11], %11 {strides = array<i32>} : memref<1x32xf32, #tpu.memory_space<vmem>>, vector<1x32xf32>,
    } else {
    }
    %c0 = arith.constant 0 : index
    %c0_1 = arith.constant 0 : index
    %c0_2 = arith.constant 0 : index
    %3 = vector.load %arg2[%c0, %c0_1, %c0_2] : memref<1x32x1024xf32, #tpu.memory_space<vmem>>, vector<1x32x1024xf32>
    %c0_3 = arith.constant 0 : index
    %c0_4 = arith.constant 0 : index
    %4 = vector.load %arg8[%c0_3, %c0_4] : memref<1x32xf32, #tpu.memory_space<vmem>>, vector<1x32xf32>
    %cst = arith.constant dense<0.000000e+00> : vector<1x32xf32>
    %5 = vector.multi_reduction <add>, %3, %cst [2] : vector<1x32x1024xf32> to vector<1x32xf32>
    %6 = arith.addf %4, %5 : vector<1x32xf32>
    %c0_5 = arith.constant 0 : index
    %c0_6 = arith.constant 0 : index
    %7 = vector.load %arg8[%c0_5, %c0_6] : memref<1x32xf32, #tpu.memory_space<vmem>>, vector<1x32xf32>
    tpu.vector_store %arg8[%c0_5, %c0_6], %6 {strides = array<i32>} : memref<1x32xf32, #tpu.memory_space<vmem>>, vector<1x32xf32>,
    %c0_i32_7 = arith.constant 0 : i32
    %8 = arith.cmpi eq, %arg1, %c0_i32_7 : i32
    %9 = arith.extui %8 : i1 to i32
    %c0_i32_8 = arith.constant 0 : i32
    %10 = arith.cmpi ne, %9, %c0_i32_8 : i32
    scf.if %10 {
      %c0_9 = arith.constant 0 : index
      %c0_10 = arith.constant 0 : index
      %11 = vector.load %arg8[%c0_9, %c0_10] : memref<1x32xf32, #tpu.memory_space<vmem>>, vector<1x32xf32>
      %cst_11 = arith.constant 9.765625E-4 : f32
      %12 = vector.broadcast %cst_11 : f32 to vector<1x32xf32>
      %13 = arith.mulf %11, %12 : vector<1x32xf32>
      %c0_12 = arith.constant 0 : index
      %c0_13 = arith.constant 0 : index
      %14 = vector.load %arg3[%c0_12, %c0_13] : memref<32x2xf32, #tpu.memory_space<vmem>>, vector<32x2xf32>
      %cst_14 = arith.constant dense<0.000000e+00> : vector<1x2xf32>
      %15 = tpu.matmul %13, %14, %cst_14 {dimension_numbers = #tpu.dot_dimension_numbers<[1], [0], [0], [1], [0, 0, 1, 1], [], []>} : vector<1x32xf32>, vector<32x2xf32>, vector<1x2xf32> -> vector<1x2xf32>
      %c0_15 = arith.constant 0 : index
      %c0_16 = arith.constant 0 : index
      %16 = vector.load %arg4[%c0_15, %c0_16] : memref<1x2xf32, #tpu.memory_space<vmem>>, vector<1x2xf32>
      %17 = arith.addf %15, %16 : vector<1x2xf32>
      %cst_17 = arith.constant 0.000000e+00 : f32
      %18 = vector.broadcast %cst_17 : f32 to vector<1x2xf32>
      %19 = arith.maximumf %17, %18 : vector<1x2xf32>
      %c0_18 = arith.constant 0 : index
      %c0_19 = arith.constant 0 : index
      %20 = vector.load %arg5[%c0_18, %c0_19] : memref<2x32xf32, #tpu.memory_space<vmem>>, vector<2x32xf32>
      %cst_20 = arith.constant dense<0.000000e+00> : vector<1x32xf32>
      %21 = tpu.matmul %19, %20, %cst_20 {dimension_numbers = #tpu.dot_dimension_numbers<[1], [0], [0], [1], [0, 0, 1, 1], [], []>} : vector<1x2xf32>, vector<2x32xf32>, vector<1x32xf32> -> vector<1x32xf32>
      %c0_21 = arith.constant 0 : index
      %c0_22 = arith.constant 0 : index
      %22 = vector.load %arg6[%c0_21, %c0_22] : memref<1x32xf32, #tpu.memory_space<vmem>>, vector<1x32xf32>
      %23 = arith.addf %21, %22 : vector<1x32xf32>
      %24 = arith.negf %23 : vector<1x32xf32>
      %25 = math.exp %24 : vector<1x32xf32>
      %cst_23 = arith.constant 1.000000e+00 : f32
      %26 = vector.broadcast %cst_23 : f32 to vector<1x32xf32>
      %27 = arith.addf %26, %25 : vector<1x32xf32>
      %28 = arith.divf %26, %27 : vector<1x32xf32>
      %29 = vector.shape_cast %28 : vector<1x32xf32> to vector<1x1x32xf32>
      %c0_24 = arith.constant 0 : index
      %c0_25 = arith.constant 0 : index
      %c0_26 = arith.constant 0 : index
      %30 = vector.load %arg7[%c0_24, %c0_25, %c0_26] : memref<1x1x32xf32, #tpu.memory_space<vmem>>, vector<1x1x32xf32>
      tpu.vector_store %arg7[%c0_24, %c0_25, %c0_26], %29 {strides = array<i32>} : memref<1x1x32xf32, #tpu.memory_space<vmem>>, vector<1x1x32xf32>,
    } else {
    }
    return
  }
  func.func @transform_0(%arg0: i32, %arg1: i32) -> (i32, i32, i32) {
    %c0_i32 = arith.constant 0 : i32
    %c0_i32_0 = arith.constant 0 : i32
    return %arg0, %c0_i32, %arg1 : i32, i32, i32
  }
  func.func @transform_1(%arg0: i32, %arg1: i32) -> (i32, i32) {
    %c0_i32 = arith.constant 0 : i32
    %c0_i32_0 = arith.constant 0 : i32
    %c0_i32_1 = arith.constant 0 : i32
    return %c0_i32, %c0_i32_0 : i32, i32
  }
  func.func @transform_2(%arg0: i32, %arg1: i32) -> (i32, i32) {
    %c0_i32 = arith.constant 0 : i32
    %c0_i32_0 = arith.constant 0 : i32
    %c0_i32_1 = arith.constant 0 : i32
    return %c0_i32, %c0_i32_0 : i32, i32
  }
  func.func @transform_3(%arg0: i32, %arg1: i32) -> (i32, i32) {
    %c0_i32 = arith.constant 0 : i32
    %c0_i32_0 = arith.constant 0 : i32
    %c0_i32_1 = arith.constant 0 : i32
    return %c0_i32, %c0_i32_0 : i32, i32
  }
  func.func @transform_4(%arg0: i32, %arg1: i32) -> (i32, i32) {
    %c0_i32 = arith.constant 0 : i32
    %c0_i32_0 = arith.constant 0 : i32
    %c0_i32_1 = arith.constant 0 : i32
    return %c0_i32, %c0_i32_0 : i32, i32
  }
  func.func @transform_5(%arg0: i32, %arg1: i32) -> (i32, i32, i32) {
    %c0_i32 = arith.constant 0 : i32
    %c0_i32_0 = arith.constant 0 : i32
    %c0_i32_1 = arith.constant 0 : i32
    return %arg0, %c0_i32, %c0_i32_0 : i32, i32, i32
  }
}

</mosaic_0001>

<llo_original>
// kernel: tpu_custom_call.1
$region0: #{tpu_custom_call.1}
  #allocation0 [shape = 'u32[]', space=smem, size = 0x4, offset = 0x4, fixed_abs, tag = 'smem constant byte address 0x4 - core index']
  #allocation1 [shape = 'u32[72,128]{1,0:T(1,128)}', space=vmem, size = 0x9000, scoped, tag = 'internal scratch']
  #allocation2 [shape = 'f32[1,32]{1,0:T(1,128)}', space=vmem, size = 0x200, scoped, tag = 'scratch operand']
  %s0 = inlined_call_operand.hbm [shape: f32[2,32,1024], index: 0, kind: input, shape index: {}]
  %s1 = inlined_call_operand.vmem [shape: f32[32,2], index: 1, kind: input, shape index: {}]
  %s2 = inlined_call_operand.vmem [shape: f32[1,2], index: 2, kind: input, shape index: {}]
  %s3 = inlined_call_operand.vmem [shape: f32[2,32], index: 3, kind: input, shape index: {}]
  %s4 = inlined_call_operand.vmem [shape: f32[1,32], index: 4, kind: input, shape index: {}]
  %s5 = inlined_call_operand.hbm [shape: f32[2,1,32], index: 5, kind: output, shape index: {}]
  %s6 = sld [smem:[#allocation0]]
  $region65: #{tpu_custom_call.1} parent=0
    _
  %s8 = ssub.s32 1, %s6
  %s9 = scalar_select 0, %s8, %s6
  $region1: #{tpu_custom_call.1} parent=0
    #allocation3 [shape = 'u8[262144]{0}', space=vmem, size = 0x40000, scoped, tag = 'input window, operand 0']
    #allocation4 [shape = 's32[2]{0}', space=sflag, size = 0x8, scoped, tag = 'scoped memory for tpu_custom_call.1']
    #allocation5 [shape = 's32[2]{0}', space=sflag, size = 0x8, scoped, tag = 'scoped memory for tpu_custom_call.1']
    #allocation6 [shape = 'u8[1024]{0}', space=vmem, size = 0x400, scoped, tag = 'output window, operand 0']
    %10 = vsyncpa [#allocation4], 0
    %s11 = scalar_lea.sflag [#allocation4], 1
    %12 = vsyncpa %s11, 0
    %13 = vsyncpa [#allocation5], 0
    %s14 = scalar_lea.sflag [#allocation5], 1
    %15 = vsyncpa %s14, 0
    loop: start=0, step=1, limit=4
    $region2: #{tpu_custom_call.1} parent=1 // loop_pre_header
      _
    $region3: #{tpu_custom_call.1} parent=1 // loop_header
      %s17 = sphi 0, %s21
      %p18 = scmp.ge.s32.totalorder %s17, 4
      %s24 = sphi 0, %s36
      %s25 = sphi 0, %s32
      %s26 = sphi 0, %s24
      %s27 = sphi 0, %s25
      %s28 = sphi 0, %s26
      %s29 = sphi 0, %s27
      %s41 = sphi 0, %s43
      %s44 = sphi 0, %s41
      %s45 = sphi 0, %s44
      %s61 = sphi 0, %s45
      %s65 = sphi 0, %s65
      %s67 = sphi 0, %s65
      %s68 = sphi 0, %s67
      %s82 = sphi 0, %s68
      %s86 = sphi 0, %s86
      %s88 = sphi 0, %s86
      %s89 = sphi 0, %s88
      %s103 = sphi 0, %s89
      %s107 = sphi 0, %s107
      %s109 = sphi 0, %s107
      %s110 = sphi 0, %s109
      %s124 = sphi 0, %s110
      %s128 = sphi 0, %s128
      %s130 = sphi 0, %s128
      %s131 = sphi 0, %s130
      %s145 = sphi 0, %s131
      %s151 = sphi 0, %s153
      %s154 = sphi 0, %s151
      %s155 = sphi 0, %s154
      %s171 = sphi 0, %s155
    $region4: #{tpu_custom_call.1} parent=1 // loop_header_branch
      %20 = sbr.rel (%p18) target = $region8
    $region5: #{tpu_custom_call.1} parent=1 // loop_body
      %s22 = ssub.s32 %s17, 1
      %s23 = ssub.s32 %s17, 2
      %s30 = sadd.s32 1, %s25
      %p31 = scmp.ge.s32.totalorder %s30, 1
      %s32 = scalar_select %p31, 0, %s30
      %s33 = sadd.s32 1, %s24
      %s34 = scalar_select %p31, %s33, %s24
      %p35 = scmp.ge.s32.totalorder %s34, 2
      %s36 = scalar_select %p35, 0, %s34
      %s37 = ssub.s32 %s24, %s36
      %s38 = ssub.s32 %s25, %s32
      %s39 = sor.u32 %s37, %s38
      %p40 = scmp.eq.s32.totalorder %s39, 0
      %s42 = sadd.s32 %s41, 1
      %s43 = scalar_select %p40, %s41, %s42
      %p46 = pneg %p40
      %p47 = scmp.eq.s32.totalorder %s17, 1
      %p48 = por %p46, %p47
      %p49 = scmp.ne.s32.totalorder %s41, %s44
      %p50 = scmp.eq.s32.totalorder %s17, 0
      %p51 = por %p49, %p50
      %p52 = scmp.ne.s32.totalorder %s41, %s44
      %p53 = scmp.eq.s32.totalorder %s22, 1
      %p54 = por %p52, %p53
      %p55 = scmp.ne.s32.totalorder %s44, %s45
      %p56 = scmp.eq.s32.totalorder %s22, 0
      %p57 = por %p55, %p56
      %p58 = scmp.ne.s32.totalorder %s44, %s45
      %p59 = scmp.eq.s32.totalorder %s23, 1
      %p60 = por %p58, %p59
      %p62 = scmp.ne.s32.totalorder %s45, %s61
      %p63 = scmp.eq.s32.totalorder %s23, 0
      %p64 = por %p62, %p63
      %s66 = sadd.s32 %s65, 1
      %p69 = scmp.eq.s32.totalorder %s17, 1
      %p70 = scmp.ne.s32.totalorder %s65, %s67
      %p71 = scmp.eq.s32.totalorder %s17, 0
      %p72 = por %p70, %p71
      %p73 = scmp.ne.s32.totalorder %s65, %s67
      %p74 = scmp.eq.s32.totalorder %s22, 1
      %p75 = por %p73, %p74
      %p76 = scmp.ne.s32.totalorder %s67, %s68
      %p77 = scmp.eq.s32.totalorder %s22, 0
      %p78 = por %p76, %p77
      %p79 = scmp.ne.s32.totalorder %s67, %s68
      %p80 = scmp.eq.s32.totalorder %s23, 1
      %p81 = por %p79, %p80
      %p83 = scmp.ne.s32.totalorder %s68, %s82
      %p84 = scmp.eq.s32.totalorder %s23, 0
      %p85 = por %p83, %p84
      %s87 = sadd.s32 %s86, 1
      %p90 = scmp.eq.s32.totalorder %s17, 1
      %p91 = scmp.ne.s32.totalorder %s86, %s88
      %p92 = scmp.eq.s32.totalorder %s17, 0
      %p93 = por %p91, %p92
      %p94 = scmp.ne.s32.totalorder %s86, %s88
      %p95 = scmp.eq.s32.totalorder %s22, 1
      %p96 = por %p94, %p95
      %p97 = scmp.ne.s32.totalorder %s88, %s89
      %p98 = scmp.eq.s32.totalorder %s22, 0
      %p99 = por %p97, %p98
      %p100 = scmp.ne.s32.totalorder %s88, %s89
      %p101 = scmp.eq.s32.totalorder %s23, 1
      %p102 = por %p100, %p101
      %p104 = scmp.ne.s32.totalorder %s89, %s103
      %p105 = scmp.eq.s32.totalorder %s23, 0
      %p106 = por %p104, %p105
      %s108 = sadd.s32 %s107, 1
      %p111 = scmp.eq.s32.totalorder %s17, 1
      %p112 = scmp.ne.s32.totalorder %s107, %s109
      %p113 = scmp.eq.s32.totalorder %s17, 0
      %p114 = por %p112, %p113
      %p115 = scmp.ne.s32.totalorder %s107, %s109
      %p116 = scmp.eq.s32.totalorder %s22, 1
      %p117 = por %p115, %p116
      %p118 = scmp.ne.s32.totalorder %s109, %s110
      %p119 = scmp.eq.s32.totalorder %s22, 0
      %p120 = por %p118, %p119
      %p121 = scmp.ne.s32.totalorder %s109, %s110
      %p122 = scmp.eq.s32.totalorder %s23, 1
      %p123 = por %p121, %p122
      %p125 = scmp.ne.s32.totalorder %s110, %s124
      %p126 = scmp.eq.s32.totalorder %s23, 0
      %p127 = por %p125, %p126
      %s129 = sadd.s32 %s128, 1
      %p132 = scmp.eq.s32.totalorder %s17, 1
      %p133 = scmp.ne.s32.totalorder %s128, %s130
      %p134 = scmp.eq.s32.totalorder %s17, 0
      %p135 = por %p133, %p134
      %p136 = scmp.ne.s32.totalorder %s128, %s130
      %p137 = scmp.eq.s32.totalorder %s22, 1
      %p138 = por %p136, %p137
      %p139 = scmp.ne.s32.totalorder %s130, %s131
      %p140 = scmp.eq.s32.totalorder %s22, 0
      %p141 = por %p139, %p140
      %p142 = scmp.ne.s32.totalorder %s130, %s131
      %p143 = scmp.eq.s32.totalorder %s23, 1
      %p144 = por %p142, %p143
      %p146 = scmp.ne.s32.totalorder %s131, %s145
      %p147 = scmp.eq.s32.totalorder %s23, 0
      %p148 = por %p146, %p147
      %s149 = ssub.s32 %s24, %s36
      %p150 = scmp.eq.s32.totalorder %s149, 0
      %s152 = sadd.s32 %s151, 1
      %s153 = scalar_select %p150, %s151, %s152
      %p156 = pneg %p150
      %p157 = scmp.eq.s32.totalorder %s17, 1
      %p158 = por %p156, %p157
      %p159 = scmp.ne.s32.totalorder %s151, %s154
      %p160 = scmp.eq.s32.totalorder %s17, 0
      %p161 = por %p159, %p160
      %p162 = scmp.ne.s32.totalorder %s151, %s154
      %p163 = scmp.eq.s32.totalorder %s22, 1
      %p164 = por %p162, %p163
      %p165 = scmp.ne.s32.totalorder %s154, %s155
      %p166 = scmp.eq.s32.totalorder %s22, 0
      %p167 = por %p165, %p166
      %p168 = scmp.ne.s32.totalorder %s154, %s155
      %p169 = scmp.eq.s32.totalorder %s23, 1
      %p170 = por %p168, %p169
      %p172 = scmp.ne.s32.totalorder %s155, %s171
      %p173 = scmp.eq.s32.totalorder %s23, 0
      %p174 = por %p172, %p173
      %p175 = scmp.le.s32.totalorder 1, %s17
      %p176 = scmp.lt.s32.totalorder %s17, 3
      %p177 = pnand %p175, %p176
      %p178 = pneg %p177
      // Predicated region
      $region9: #{tpu_custom_call.1} parent=5 // pred_check
        _
      $region10: #{tpu_custom_call.1} parent=5 // pred_check_branch
        %180 = sbr.rel (%p177) target = $region12
      $region11: #{tpu_custom_call.1} parent=5 // pred_region
        %s181 = ssub.s32 %s17, 1
        // Predicated region
        $region13: #{tpu_custom_call.1} parent=11 // pred_check
          %p182 = pneg %p78
        $region14: #{tpu_custom_call.1} parent=11 // pred_check_branch
          %184 = sbr.rel (%p182) target = $region16
        $region15: #{tpu_custom_call.1} parent=11 // pred_region
          _
        $region16: #{tpu_custom_call.1} parent=11 // pred_fallthru
          _
        // Predicated region
        $region17: #{tpu_custom_call.1} parent=11 // pred_check
          %p185 = pneg %p99
        $region18: #{tpu_custom_call.1} parent=11 // pred_check_branch
          %187 = sbr.rel (%p185) target = $region20
        $region19: #{tpu_custom_call.1} parent=11 // pred_region
          _
        $region20: #{tpu_custom_call.1} parent=11 // pred_fallthru
          _
        // Predicated region
        $region21: #{tpu_custom_call.1} parent=11 // pred_check
          %p188 = pneg %p120
        $region22: #{tpu_custom_call.1} parent=11 // pred_check_branch
          %190 = sbr.rel (%p188) target = $region24
        $region23: #{tpu_custom_call.1} parent=11 // pred_region
          _
        $region24: #{tpu_custom_call.1} parent=11 // pred_fallthru
          _
        // Predicated region
        $region25: #{tpu_custom_call.1} parent=11 // pred_check
          %p191 = pneg %p141
        $region26: #{tpu_custom_call.1} parent=11 // pred_check_branch
          %193 = sbr.rel (%p191) target = $region28
        $region27: #{tpu_custom_call.1} parent=11 // pred_region
          _
        $region28: #{tpu_custom_call.1} parent=11 // pred_fallthru
          _
      $region12: #{tpu_custom_call.1} parent=5 // pred_fallthru
        _
      %p194 = scmp.lt.s32.totalorder %s17, 2
      // Predicated region
      $region29: #{tpu_custom_call.1} parent=5 // pred_check
        %p195 = pneg %p194
      $region30: #{tpu_custom_call.1} parent=5 // pred_check_branch
        %197 = sbr.rel (%p195) target = $region32
      $region31: #{tpu_custom_call.1} parent=5 // pred_region
        // Predicated region
        $region33: #{tpu_custom_call.1} parent=31 // pred_check
          %p198 = pneg %p51
        $region34: #{tpu_custom_call.1} parent=31 // pred_check_branch
          %200 = sbr.rel (%p198) target = $region36
        $region35: #{tpu_custom_call.1} parent=31 // pred_region
          %s201 = sand.u32 %s41, 1
          %s202 = scalar_lea.sflag [#allocation4], %s201
          %s203 = sand.u32 %s41, 1
          %s204 = smul.addr %s203, 256
          %s205 = scalar_lea.vmem [#allocation3], %s204
          %s206 = smul.u32 8, %s25
          %208 = vsyncadd %s202, 0
          %s209 = smul.addr %s24, 32
          %s210 = sadd.s32 %s206, %s209
          %s211 = smul.addr %s210, 8
          %s212 = scalar_lea.hbm %s0, %s211
          %s213 = sshll.u32 %s212, 4
          %s214 = int_to_ptr.hbm [resolvable:$true] %s213
          %s215 = sshll.u32 %s205, 4
          %s216 = int_to_ptr.vmem [resolvable:$true] %s215
          %221 = dma.hbm_to_vmem [thread:$0]  %s214, 4096, %s216, %s202, 1024, 1024, 64
        $region36: #{tpu_custom_call.1} parent=31 // pred_fallthru
          _
      $region32: #{tpu_custom_call.1} parent=5 // pred_fallthru
        _
      %p222 = scmp.le.s32.totalorder 1, %s17
      %p223 = scmp.lt.s32.totalorder %s17, 3
      %p224 = pnand %p222, %p223
      %p225 = pneg %p224
      // Predicated region
      $region37: #{tpu_custom_call.1} parent=5 // pred_check
        _
      $region38: #{tpu_custom_call.1} parent=5 // pred_check_branch
        %227 = sbr.rel (%p224) target = $region40
      $region39: #{tpu_custom_call.1} parent=5 // pred_region
        %s228 = ssub.s32 %s17, 1
        %s229 = sand.u32 %s44, 1
        %s230 = scalar_lea.sflag [#allocation4], %s229
        %s231 = sand.u32 %s44, 1
        %s232 = smul.addr %s231, 256
        %s233 = scalar_lea.vmem [#allocation3], %s232
        // Predicated region
        $region41: #{tpu_custom_call.1} parent=39 // pred_check
          %p234 = pneg %p57
        $region42: #{tpu_custom_call.1} parent=39 // pred_check_branch
          %236 = sbr.rel (%p234) target = $region44
        $region43: #{tpu_custom_call.1} parent=39 // pred_region
          %238 = dma.done %s230, 4096
        $region44: #{tpu_custom_call.1} parent=39 // pred_fallthru
          _
        %s239 = sand.u32 %s44, 1
        %s240 = scalar_lea.sflag [#allocation4], %s239
        %s241 = sand.u32 %s44, 1
        %s242 = smul.addr %s241, 256
        %s243 = scalar_lea.vmem [#allocation3], %s242
        %p244 = pneg %p57
        %p245 = pneg %p54
        %p246 = pneg %p78
        %p247 = pneg %p75
        %p248 = pneg %p99
        %p249 = pneg %p96
        %p250 = pneg %p120
        %p251 = pneg %p117
        %p252 = pneg %p141
        %p253 = pneg %p138
        %p254 = pneg %p167
        %p255 = pneg %p164
        %s256 = sand.u32 %s154, 1
        %s257 = scalar_lea.sflag [#allocation5], %s256
        %s258 = sand.u32 %s154, 1
        %s259 = scalar_lea.vmem [#allocation6], %s258
        %s260 = smul.u32 8, %s27
        %p261 = scmp.eq.s32.totalorder %s27, 0
        // Predicated region
        $region45: #{tpu_custom_call.1} parent=39 // pred_check
          %p262 = pneg %p261
        $region46: #{tpu_custom_call.1} parent=39 // pred_check_branch
          %264 = sbr.rel (%p262) target = $region48
        $region47: #{tpu_custom_call.1} parent=39 // pred_region
          %vm265 = vcmask 253952
          %266 = vst.msk [vmem:[#allocation2] sm:$0x1] %vm265, 0.0
        $region48: #{tpu_custom_call.1} parent=39 // pred_fallthru
          _
        %v267 = vld [vmem:[%s233] sm:$0xff]
        %v268 = vld [vmem:[%s233 + $0x8] sm:$0xff]
        %v269 = vld [vmem:[%s233 + $0x10] sm:$0xff]
        %v270 = vld [vmem:[%s233 + $0x18] sm:$0xff]
        %v271 = vld [vmem:[%s233 + $0x20] sm:$0xff]
        %v272 = vld [vmem:[%s233 + $0x28] sm:$0xff]
        %v273 = vld [vmem:[%s233 + $0x30] sm:$0xff]
        %v274 = vld [vmem:[%s233 + $0x38] sm:$0xff]
        %v275 = vld [vmem:[%s233 + $0x40] sm:$0xff]
        %v276 = vld [vmem:[%s233 + $0x48] sm:$0xff]
        %v277 = vld [vmem:[%s233 + $0x50] sm:$0xff]
        %v278 = vld [vmem:[%s233 + $0x58] sm:$0xff]
        %v279 = vld [vmem:[%s233 + $0x60] sm:$0xff]
        %v280 = vld [vmem:[%s233 + $0x68] sm:$0xff]
        %v281 = vld [vmem:[%s233 + $0x70] sm:$0xff]
        %v282 = vld [vmem:[%s233 + $0x78] sm:$0xff]
        %v283 = vld [vmem:[%s233 + $0x80] sm:$0xff]
        %v284 = vld [vmem:[%s233 + $0x88] sm:$0xff]
        %v285 = vld [vmem:[%s233 + $0x90] sm:$0xff]
        %v286 = vld [vmem:[%s233 + $0x98] sm:$0xff]
        %v287 = vld [vmem:[%s233 + $0xa0] sm:$0xff]
        %v288 = vld [vmem:[%s233 + $0xa8] sm:$0xff]
        %v289 = vld [vmem:[%s233 + $0xb0] sm:$0xff]
        %v290 = vld [vmem:[%s233 + $0xb8] sm:$0xff]
        %v291 = vld [vmem:[%s233 + $0xc0] sm:$0xff]
        %v292 = vld [vmem:[%s233 + $0xc8] sm:$0xff]
        %v293 = vld [vmem:[%s233 + $0xd0] sm:$0xff]
        %v294 = vld [vmem:[%s233 + $0xd8] sm:$0xff]
        %v295 = vld [vmem:[%s233 + $0xe0] sm:$0xff]
        %v296 = vld [vmem:[%s233 + $0xe8] sm:$0xff]
        %v297 = vld [vmem:[%s233 + $0xf0] sm:$0xff]
        %v298 = vld [vmem:[%s233 + $0xf8] sm:$0xff]
        %v299 = vld [vmem:[#allocation2] sm:$0x1]
        %v300 = vadd.f32 %v267, %v268
        %v301 = vadd.f32 %v300, %v269
        %v302 = vadd.f32 %v301, %v270
        %v303 = vadd.f32 %v302, %v271
        %v304 = vadd.f32 %v303, %v272
        %v305 = vadd.f32 %v304, %v273
        %v306 = vadd.f32 %v305, %v274
        %307 = vadd.xlane.f32.xlu0 %v306
        %v308 = vpop.xlane.xlu0 %307
        %v309 = vadd.f32 %v275, %v276
        %v310 = vadd.f32 %v309, %v277
        %v311 = vadd.f32 %v310, %v278
        %v312 = vadd.f32 %v311, %v279
        %v313 = vadd.f32 %v312, %v280
        %v314 = vadd.f32 %v313, %v281
        %v315 = vadd.f32 %v314, %v282
        %316 = vadd.xlane.f32.xlu0 %v315
        %v317 = vpop.xlane.xlu0 %316
        %v318 = vadd.f32 %v283, %v284
        %v319 = vadd.f32 %v318, %v285
        %v320 = vadd.f32 %v319, %v286
        %v321 = vadd.f32 %v320, %v287
        %v322 = vadd.f32 %v321, %v288
        %v323 = vadd.f32 %v322, %v289
        %v324 = vadd.f32 %v323, %v290
        %325 = vadd.xlane.f32.xlu0 %v324
        %v326 = vpop.xlane.xlu0 %325
        %v327 = vadd.f32 %v291, %v292
        %v328 = vadd.f32 %v327, %v293
        %v329 = vadd.f32 %v328, %v294
        %v330 = vadd.f32 %v329, %v295
        %v331 = vadd.f32 %v330, %v296
        %v332 = vadd.f32 %v331, %v297
        %v333 = vadd.f32 %v332, %v298
        %334 = vadd.xlane.f32.xlu0 %v333
        %v335 = vpop.xlane.xlu0 %334
        %v340 = vperm.slane %v308, 0
        %v341 = vperm.slane %v308, 1
        %v342 = vperm.slane %v308, 2
        %v343 = vperm.slane %v308, 3
        %v344 = vperm.slane %v308, 4
        %v345 = vperm.slane %v308, 5
        %v346 = vperm.slane %v308, 6
        %v347 = vperm.slane %v308, 7
        %v348 = vperm.slane %v317, 0
        %v349 = vperm.slane %v317, 1
        %v350 = vperm.slane %v317, 2
        %v351 = vperm.slane %v317, 3
        %v352 = vperm.slane %v317, 4
        %v353 = vperm.slane %v317, 5
        %v354 = vperm.slane %v317, 6
        %v355 = vperm.slane %v317, 7
        %v356 = vperm.slane %v326, 0
        %v357 = vperm.slane %v326, 1
        %v358 = vperm.slane %v326, 2
        %v359 = vperm.slane %v326, 3
        %v360 = vperm.slane %v326, 4
        %v361 = vperm.slane %v326, 5
        %v362 = vperm.slane %v326, 6
        %v363 = vperm.slane %v326, 7
        %v364 = vperm.slane %v335, 0
        %v365 = vperm.slane %v335, 1
        %v366 = vperm.slane %v335, 2
        %v367 = vperm.slane %v335, 3
        %v368 = vperm.slane %v335, 4
        %v369 = vperm.slane %v335, 5
        %v370 = vperm.slane %v335, 6
        %v371 = vperm.slane %v335, 7
        %372 = vst [vmem:[#allocation1] ss:$9 sm:$0xff] %v340
        %s373 = scalar_lea.vmem [#allocation1], 1
        %374 = vst [vmem:[%s373] ss:$9 sm:$0xff] %v341
        %s375 = scalar_lea.vmem [#allocation1], 2
        %376 = vst [vmem:[%s375] ss:$9 sm:$0xff] %v342
        %s377 = scalar_lea.vmem [#allocation1], 3
        %378 = vst [vmem:[%s377] ss:$9 sm:$0xff] %v343
        %s379 = scalar_lea.vmem [#allocation1], 4
        %380 = vst [vmem:[%s379] ss:$9 sm:$0xff] %v344
        %s381 = scalar_lea.vmem [#allocation1], 5
        %382 = vst [vmem:[%s381] ss:$9 sm:$0xff] %v345
        %s383 = scalar_lea.vmem [#allocation1], 6
        %384 = vst [vmem:[%s383] ss:$9 sm:$0xff] %v346
        %s385 = scalar_lea.vmem [#allocation1], 7
        %386 = vst [vmem:[%s385] ss:$9 sm:$0xff] %v347
        %v387 = vld [vmem:[#allocation1] sm:$0xff]
        %388 = vst [vmem:[#allocation1] ss:$9 sm:$0xff] %v348
        %389 = vst [vmem:[%s373] ss:$9 sm:$0xff] %v349
        %390 = vst [vmem:[%s375] ss:$9 sm:$0xff] %v350
        %391 = vst [vmem:[%s377] ss:$9 sm:$0xff] %v351
        %392 = vst [vmem:[%s379] ss:$9 sm:$0xff] %v352
        %393 = vst [vmem:[%s381] ss:$9 sm:$0xff] %v353
        %394 = vst [vmem:[%s383] ss:$9 sm:$0xff] %v354
        %395 = vst [vmem:[%s385] ss:$9 sm:$0xff] %v355
        %v396 = vld [vmem:[#allocation1] sm:$0xff]
        %397 = vst [vmem:[#allocation1] ss:$9 sm:$0xff] %v356
        %398 = vst [vmem:[%s373] ss:$9 sm:$0xff] %v357
        %399 = vst [vmem:[%s375] ss:$9 sm:$0xff] %v358
        %400 = vst [vmem:[%s377] ss:$9 sm:$0xff] %v359
        %401 = vst [vmem:[%s379] ss:$9 sm:$0xff] %v360
        %402 = vst [vmem:[%s381] ss:$9 sm:$0xff] %v361
        %403 = vst [vmem:[%s383] ss:$9 sm:$0xff] %v362
        %404 = vst [vmem:[%s385] ss:$9 sm:$0xff] %v363
        %v405 = vld [vmem:[#allocation1] sm:$0xff]
        %406 = vst [vmem:[#allocation1] ss:$9 sm:$0xff] %v364
        %407 = vst [vmem:[%s373] ss:$9 sm:$0xff] %v365
        %408 = vst [vmem:[%s375] ss:$9 sm:$0xff] %v366
        %409 = vst [vmem:[%s377] ss:$9 sm:$0xff] %v367
        %410 = vst [vmem:[%s379] ss:$9 sm:$0xff] %v368
        %411 = vst [vmem:[%s381] ss:$9 sm:$0xff] %v369
        %412 = vst [vmem:[%s383] ss:$9 sm:$0xff] %v370
        %413 = vst [vmem:[%s385] ss:$9 sm:$0xff] %v371
        %v414 = vld [vmem:[#allocation1] sm:$0xff]
        %415 = vset.pattern.permute.xlu0 0
        %416 = vperm.xlu0 %415, %v387
        %v417 = vpop.permute.xlu0 %416
        %418 = vset.pattern.permute.xlu0 0
        %419 = vperm.xlu0 %418, %v396
        %v420 = vpop.permute.xlu0 %419
        %421 = vset.pattern.permute.xlu0 0
        %422 = vperm.xlu0 %421, %v405
        %v423 = vpop.permute.xlu0 %422
        %424 = vset.pattern.permute.xlu0 0
        %425 = vperm.xlu0 %424, %v414
        %v426 = vpop.permute.xlu0 %425
        %v427 = vlaneseq
        %v428 = vand.u32 %v427, 127
        %v429 = vperm.slane %v417, %v428
        %v430 = vadd.s32 %v428, 4294967288
        %v431 = vperm.slane %v420, %v430
        %vm432 = vcmask 130112
        %v433 = vsel %vm432, %v431, %v429
        %v434 = vadd.s32 %v428, 4294967280
        %v435 = vperm.slane %v423, %v434
        %vm436 = vcmask 195712
        %v437 = vsel %vm436, %v435, %v433
        %v438 = vadd.s32 %v428, 4294967272
        %v439 = vperm.slane %v426, %v438
        %vm440 = vcmask 261312
        %v441 = vsel %vm440, %v439, %v437
        %v443 = vadd.f32 %v299, %v441
        %vm444 = vcmask 253952
        %445 = vst.msk [vmem:[#allocation2] sm:$0x1] %vm444, %v443
        // Predicated region
        $region49: #{tpu_custom_call.1} parent=39 // pred_check
          %p446 = pneg %p261
        $region50: #{tpu_custom_call.1} parent=39 // pred_check_branch
          %448 = sbr.rel (%p446) target = $region52
        $region51: #{tpu_custom_call.1} parent=39 // pred_region
          %v449 = vld [vmem:[#allocation2] sm:$0x1]
          %v450 = vmul.f32 %v449, 0.0009765625
          %v451 = vld [vmem:[%s1] sm:$0xff]
          %v452 = vld [vmem:[%s1 + $0x8] sm:$0xff]
          %v453 = vld [vmem:[%s1 + $0x10] sm:$0xff]
          %v454 = vld [vmem:[%s1 + $0x18] sm:$0xff]
          %v455 = vld [vmem:[%s2] sm:$0x1]
          %vm456 = vcmask 261120
          %v458 = vsel %vm456, %v450, 0
          %460 = vmatpush.msra.mxu0 0.0
          %461 = vmatpush.msra.mxu0 0.0
          %462 = vmatpush.msra.mxu0 0.0
          %463 = vmatpush.msra.mxu0 0.0
          %464 = vmatpush.msra.mxu0 0.0
          %465 = vmatpush.msra.mxu0 0.0
          %466 = vmatpush.msra.mxu0 0.0
          %467 = vmatpush.msra.mxu0 0.0
          %468 = vmatpush.msra.mxu0 0.0
          %469 = vmatpush.msra.mxu0 0.0
          %470 = vmatpush.msra.mxu0 0.0
          %471 = vmatpush.msra.mxu0 0.0
          %472 = vmatpush.msra.mxu0 %v454
          %473 = vmatpush.msra.mxu0 %v453
          %474 = vmatpush.msra.mxu0 %v452
          %475 = vmatpush.msra.mxu0 %v451
          %476 = vmatmul.f32.gmra.mxu0 %v458
          %v477 = vpop.f32.mrf.mxu0
          %v478 = vadd.f32 %v455, %v477
          %479 = vdwg.mxu0
          %v480 = vmax.f32 %v478, 0.0
          %v481 = vld [vmem:[%s3] sm:$0x3]
          %v482 = vld [vmem:[%s4] sm:$0x1]
          %vm483 = vcmask 15360
          %v485 = vsel %vm483, %v480, 0
          %vm487 = vcmask 1041408
          %v489 = vsel %vm487, %v481, 0
          %491 = vmatpush.msra.mxu0 0.0
          %492 = vmatpush.msra.mxu0 0.0
          %493 = vmatpush.msra.mxu0 0.0
          %494 = vmatpush.msra.mxu0 0.0
          %495 = vmatpush.msra.mxu0 0.0
          %496 = vmatpush.msra.mxu0 0.0
          %497 = vmatpush.msra.mxu0 0.0
          %498 = vmatpush.msra.mxu0 0.0
          %499 = vmatpush.msra.mxu0 0.0
          %500 = vmatpush.msra.mxu0 0.0
          %501 = vmatpush.msra.mxu0 0.0
          %502 = vmatpush.msra.mxu0 0.0
          %503 = vmatpush.msra.mxu0 0.0
          %504 = vmatpush.msra.mxu0 0.0
          %505 = vmatpush.msra.mxu0 0.0
          %506 = vmatpush.msra.mxu0 %v489
          %507 = vmatmul.f32.gmra.mxu0 %v485
          %v508 = vpop.f32.mrf.mxu0
          %v509 = vadd.f32 %v482, %v508
          %510 = vdwg.mxu0
          %v511 = vxor.u32 %v509, 2147483648
          %v512 = vmul.f32 %v511, 1.442695
          %v513 = vpow.pop %v512
          %v514 = vadd.f32 %v513, 1.0
          %v515 = vrcp.pop %v514
          %v516 = vmul.f32 %v514, %v515
          %v517 = vsub.f32 1.0, %v516
          %v518 = vmul.f32 %v515, %v517
          %v519 = vadd.f32 %v515, %v518
          %vm520 = vweird.f32 %v514
          %vm521 = vweird.f32 %v515
          %vm522 = vmor %vm520, %vm521
          %v523 = vsel %vm522, %v515, %v519
          %v524 = vand.u32 2147483647, %v514
          %vm525 = vcmp.eq.f32.partialorder %v524, 8.507059e+37
          %v526 = vand.u32 %v514, 2147483648
          %v527 = vor.u32 1.1754944e-38, %v526
          %v528 = vsel %vm525, %v527, %v523
          %v529 = vmul.f32 1.0, %v528
          %530 = vst.msk [vmem:[%s259] sm:$0x1] %vm444, %v529
        $region52: #{tpu_custom_call.1} parent=39 // pred_fallthru
          _
        %s531 = sand.u32 %s154, 1
        %s532 = scalar_lea.sflag [#allocation5], %s531
        %s533 = sand.u32 %s154, 1
        %s534 = scalar_lea.vmem [#allocation6], %s533
        // Predicated region
        $region53: #{tpu_custom_call.1} parent=39 // pred_check
          %p535 = pneg %p164
        $region54: #{tpu_custom_call.1} parent=39 // pred_check_branch
          %537 = sbr.rel (%p535) target = $region56
        $region55: #{tpu_custom_call.1} parent=39 // pred_region
          %539 = vsyncadd %s532, 0
          %s540 = scalar_lea.hbm %s5, %s26
          %s542 = sshll.u32 %s534, 4
          %s543 = int_to_ptr.vmem [resolvable:$true] %s542
          %s544 = sshll.u32 %s540, 4
          %s545 = int_to_ptr.hbm [resolvable:$true] %s544
          %547 = dma.vmem_to_hbm [thread:$0]  %s543, 16, %s545, %s532
        $region56: #{tpu_custom_call.1} parent=39 // pred_fallthru
          _
      $region40: #{tpu_custom_call.1} parent=5 // pred_fallthru
        _
      %p548 = scmp.le.s32.totalorder 2, %s17
      // Predicated region
      $region57: #{tpu_custom_call.1} parent=5 // pred_check
        %p549 = pneg %p548
      $region58: #{tpu_custom_call.1} parent=5 // pred_check_branch
        %551 = sbr.rel (%p549) target = $region60
      $region59: #{tpu_custom_call.1} parent=5 // pred_region
        %s552 = ssub.s32 %s17, 2
        // Predicated region
        $region61: #{tpu_custom_call.1} parent=59 // pred_check
          %p553 = pneg %p170
        $region62: #{tpu_custom_call.1} parent=59 // pred_check_branch
          %555 = sbr.rel (%p553) target = $region64
        $region63: #{tpu_custom_call.1} parent=59 // pred_region
          %s556 = sand.u32 %s155, 1
          %s557 = scalar_lea.sflag [#allocation5], %s556
          %s558 = sand.u32 %s155, 1
          %s559 = scalar_lea.vmem [#allocation6], %s558
          %561 = dma.done %s557, 16
        $region64: #{tpu_custom_call.1} parent=59 // pred_fallthru
          _
      $region60: #{tpu_custom_call.1} parent=5 // pred_fallthru
        _
    $region6: #{tpu_custom_call.1} parent=1 // loop_footer
      %s21 = sadd.s32 1, %s17
    $region7: #{tpu_custom_call.1} parent=1 // loop_footer_branch
      %16 = sbr.rel target = $region3
    $region8: #{tpu_custom_call.1} parent=1 // loop_exit
      _
    %562 = vsyncpa [#allocation4], 1
    %s563 = scalar_lea.sflag [#allocation4], 1
    %564 = vsyncpa %s563, 1
    %565 = vsyncpa [#allocation5], 1
    %s566 = scalar_lea.sflag [#allocation5], 1
    %567 = vsyncpa %s566, 1

</llo_original>
